<compile_context>
chip_gen: v7x
topology: tpu7x:2x2x1
jax: 0.10.0
libtpu: 0.0.40
codegen_flags: <defaults>
</compile_context>

<pallas_src>
import jax
import jax.numpy as jnp
from jax.experimental import pallas as pl
from jax.experimental.pallas import tpu as pltpu


def _round_up(x, m):
    return ((x + m - 1) // m) * m


def _make_head_kernel(*, tile_t, t_chunk, t_total, needs_t_mask):
    """Grid = (batch tiles [parallel], T tiles [arbitrary reduction])."""

    def kernel(x_ref, w1_ref, b1_ref, w2_ref, b2_ref, out_ref, acc_ref):
        t = pl.program_id(1)

        @pl.when(t == 0)
        def _init():
            acc_ref[...] = jnp.zeros_like(acc_ref)

        # Chunked T-sum straight from the streamed tile (f32 accumulation).
        # Chunking bounds the live f32 temporaries; the cast is a no-op for
        # f32 inputs and per-chunk (bounded) for narrower input dtypes.
        for start in range(0, tile_t, t_chunk):
            size = min(t_chunk, tile_t - start)
            chunk = x_ref[:, pl.ds(start, size), :].astype(jnp.float32)
            if needs_t_mask:
                # Zero out rows past the true T (ragged last t-tile reads
                # unspecified data; garbage must not pollute the sum).
                row = (t * tile_t + start
                       + jax.lax.broadcasted_iota(jnp.int32, (1, size, 1), 1))
                chunk = jnp.where(row < t_total, chunk, 0.0)
            acc_ref[...] += jnp.sum(chunk, axis=1)

        @pl.when(t == pl.num_programs(1) - 1)
        def _epilogue():
            # bf16 MXU operands, f32 accumulation.  BN + 1/T are folded into
            # w1/b1 in the wrapper, so this is just: dot, +b, relu, dot, +b.
            feat = acc_ref[...].astype(jnp.bfloat16)
            h = jnp.dot(feat, w1_ref[...], preferred_element_type=jnp.float32)
            h = jnp.maximum(h + b1_ref[...], 0.0)
            o = jnp.dot(h.astype(jnp.bfloat16), w2_ref[...],
                        preferred_element_type=jnp.float32)
            out_ref[...] = (o + b2_ref[...]).astype(out_ref.dtype)

    return kernel


def action_head_classification(feat, params, *, bn_eps=1e-5,
                               x_tile_budget_bytes=12 * 1024 * 1024):
    """feat: (N, T, J, C) float32. Returns (N, num_classes) float32."""
    N, T, J, C = feat.shape
    JC = J * C
    w1, b1, gamma, beta, run_mean, run_var, w2, b2 = params
    H = w1.shape[1]
    NC = w2.shape[1]

    # ---- Fold eval-mode BatchNorm and the 1/T mean scale into fc1 (f32). ----
    s = gamma * jax.lax.rsqrt(run_var + bn_eps)                  # (1, H)
    w1f = (w1 * s) * (1.0 / T)                                   # (JC, H)
    b1f = (b1 - run_mean) * s + beta                             # (1, H)

    # ---- Pad hidden / num_classes to lane-dense multiples of 128 (tiny). ----
    H_pad = _round_up(H, 128)
    NC_pad = _round_up(NC, 128)
    w1f = jnp.pad(w1f, ((0, 0), (0, H_pad - H)))
    b1f = jnp.pad(b1f, ((0, 0), (0, H_pad - H)))
    w2p = jnp.pad(w2, ((0, H_pad - H), (0, NC_pad - NC)))
    b2p = jnp.pad(b2, ((0, 0), (0, NC_pad - NC)))
    w1_bf = w1f.astype(jnp.bfloat16)                             # bf16 MXU operands
    w2_bf = w2p.astype(jnp.bfloat16)

    # ---- Dominant stream: feat in its native dtype, one HBM read only. ------
    # Merging the two trailing dims is layout-preserving (J-major, C-minor ==
    # permute(0,2,3,1).mean(-1).reshape ordering).  No cast, no pad copy.
    # JC is used as a full-extent block dim, so it needs no 128-padding pass
    # (it already is a multiple of 128 for the stock config: 512*17 = 68*128).
    x = feat.reshape(N, T, JC)
    itemsize = jnp.dtype(x.dtype).itemsize

    # ---- Batch tile: >=2 "parallel" tiles when N allows (v7x: 2 TCs), grow
    # toward 256 for large N (v6e/v7x 256-wide MXU). ---------------------------
    if N >= 512:
        tile_n = 256
    elif N > 8:
        tile_n = _round_up(pl.cdiv(N, 2), 8)
    else:
        tile_n = _round_up(max(N, 1), 8)
    # Keep even the minimal (tile_n, 8, JC) double-buffered slab in budget.
    while tile_n > 8 and 2 * tile_n * 8 * JC * itemsize > x_tile_budget_bytes:
        tile_n = _round_up(tile_n // 2, 8)

    # ---- T tile: multiple of 8 sublanes; prefer a divisor of T so no padding
    # and no in-kernel masking is needed; otherwise mask the ragged last tile.
    max_tt = (x_tile_budget_bytes // (2 * tile_n * JC * itemsize)) // 8 * 8
    max_tt = max(8, max_tt)
    if T <= max_tt:
        tile_t = T
    else:
        tile_t = 0
        for cand in range(max_tt, 7, -8):
            if T % cand == 0:
                tile_t = cand
                break
        if tile_t == 0:
            tile_t = max_tt
    needs_t_mask = (T % tile_t) != 0
    t_chunk = min(32, tile_t)

    grid = (pl.cdiv(N, tile_n), pl.cdiv(T, tile_t))

    # ---- Honest VMEM accounting + cap with headroom (v7x has 64 MiB/TC). ----
    vmem_need = (
        2 * tile_n * tile_t * JC * itemsize                  # x, double-buffered
        + 2 * tile_n * NC_pad * 4                            # out, double-buffered
        + 2 * (JC * H_pad * 2 + H_pad * NC_pad * 2
               + H_pad * 4 + NC_pad * 4)                     # weights/biases (dbl-buffered)
        + tile_n * JC * 4                                    # f32 accumulator scratch
        + tile_n * t_chunk * JC * 4                          # in-flight reduction chunk
        + tile_n * max(JC, H_pad) * 4                        # epilogue temporaries
    )
    try:
        vmem_cap = int(pltpu.get_tpu_info().vmem_capacity_bytes)
    except Exception:
        vmem_cap = 64 * 1024 * 1024                          # v7x per-TC
    vmem_limit = int(min(int(0.7 * vmem_cap),
                         max(16 * 1024 * 1024, vmem_need + 4 * 1024 * 1024)))

    cost = pl.CostEstimate(
        flops=int(N * T * JC + 2 * N * (JC * H_pad + H_pad * NC_pad)),
        transcendentals=0,
        bytes_accessed=int(N * T * JC * itemsize
                           + JC * H_pad * 2 + H_pad * NC_pad * 2
                           + (H_pad + NC_pad) * 4
                           + N * NC_pad * 4),
    )

    kernel = _make_head_kernel(tile_t=tile_t, t_chunk=t_chunk, t_total=T,
                               needs_t_mask=needs_t_mask)

    out = pl.pallas_call(
        kernel,
        out_shape=jax.ShapeDtypeStruct((N, NC_pad), jnp.float32),
        grid_spec=pltpu.PrefetchScalarGridSpec(
            num_scalar_prefetch=0,
            grid=grid,
            in_specs=[
                pl.BlockSpec((tile_n, tile_t, JC), lambda i, t: (i, t, 0)),  # x (native dtype)
                pl.BlockSpec((JC, H_pad), lambda i, t: (0, 0)),              # w1 (BN+1/T folded, bf16)
                pl.BlockSpec((1, H_pad), lambda i, t: (0, 0)),               # b1 (folded, f32)
                pl.BlockSpec((H_pad, NC_pad), lambda i, t: (0, 0)),          # w2 (bf16)
                pl.BlockSpec((1, NC_pad), lambda i, t: (0, 0)),              # b2 (f32)
            ],
            out_specs=pl.BlockSpec((tile_n, NC_pad), lambda i, t: (i, 0)),
            scratch_shapes=[pltpu.VMEM((tile_n, JC), jnp.float32)],
        ),
        compiler_params=pltpu.CompilerParams(
            dimension_semantics=("parallel", "arbitrary"),
            vmem_limit_bytes=vmem_limit,
        ),
        cost_estimate=cost,
    )(x, w1_bf, b1f, w2_bf, b2p)

    return out[:, :NC]


def init_params(key, dim_rep, num_joints, hidden_dim, num_classes):
    """Deterministic PyTorch-style Linear init (uniform +-1/sqrt(fan_in))."""
    k1, k2, k3, k4 = jax.random.split(key, 4)
    fan1 = dim_rep * num_joints
    lim1 = 1.0 / jnp.sqrt(jnp.float32(fan1))
    w1 = jax.random.uniform(k1, (fan1, hidden_dim), jnp.float32, -lim1, lim1)
    b1 = jax.random.uniform(k2, (1, hidden_dim), jnp.float32, -lim1, lim1)

    fan2 = hidden_dim
    lim2 = 1.0 / jnp.sqrt(jnp.float32(fan2))
    w2 = jax.random.uniform(k3, (fan2, num_classes), jnp.float32, -lim2, lim2)
    b2 = jax.random.uniform(k4, (1, num_classes), jnp.float32, -lim2, lim2)

    gamma = jnp.ones((1, hidden_dim), jnp.float32)
    beta = jnp.zeros((1, hidden_dim), jnp.float32)
    run_mean = jnp.zeros((1, hidden_dim), jnp.float32)
    run_var = jnp.ones((1, hidden_dim), jnp.float32)
    return (w1, b1, gamma, beta, run_mean, run_var, w2, b2)


def reference_forward(feat, params, *, bn_eps=1e-5):
    """Pure-JAX f32 reference matching the PyTorch module in eval mode."""
    w1, b1, gamma, beta, run_mean, run_var, w2, b2 = params
    N, T, J, C = feat.shape
    x = jnp.transpose(feat, (0, 2, 3, 1)).mean(axis=-1).reshape(N, -1)
    h = x @ w1 + b1
    h = (h - run_mean) * jax.lax.rsqrt(run_var + bn_eps) * gamma + beta
    h = jnp.maximum(h, 0.0)
    return h @ w2 + b2


if __name__ == "__main__":
    key = jax.random.PRNGKey(0)

    def run_case(N, T, J, C, hidden_dim, num_classes, budget):
        kx, kp = jax.random.split(jax.random.fold_in(key, N * 1000 + T))
        feat = jax.random.normal(kx, (N, T, J, C), dtype=jnp.float32)
        params = init_params(kp, dim_rep=C, num_joints=J,
                             hidden_dim=hidden_dim, num_classes=num_classes)
        out = action_head_classification(feat, params,
                                         x_tile_budget_bytes=budget)
        out = jax.block_until_ready(out)
        ref = reference_forward(feat, params)
        assert out.shape == (N, num_classes)
        max_err = jnp.max(jnp.abs(out - ref))
        # bf16 matmul operands (f32 accumulation, f32 streamed input).
        assert jnp.allclose(out, ref, atol=2e-2, rtol=2e-2), \
            f"mismatch vs reference, max abs err={max_err}"

    # Case 1: tiny shapes -> single T tile, single batch tile.
    run_case(N=6, T=12, J=16, C=24, hidden_dim=96, num_classes=11,
             budget=12 * 1024 * 1024)

    # Case 2: a deliberately small x-tile budget forces the grid T-reduction
    # (including the ragged-T in-kernel mask) and >=2 parallel batch tiles
    # (with a partial edge batch block), exercising the multi-tile paths.
    run_case(N=20, T=44, J=16, C=24, hidden_dim=96, num_classes=11,
             budget=96 * 1024)

    print("KERNEL_OK")
</pallas_src>

<mosaic_0001>
module attributes {stable_mosaic.version = 11 : i64} {
  func.func @kernel(%arg0: i32, %arg1: i32, %arg2: memref<8x12x384xf32, #tpu.memory_space<vmem>>, %arg3: memref<384x128xbf16, #tpu.memory_space<vmem>>, %arg4: memref<1x128xf32, #tpu.memory_space<vmem>>, %arg5: memref<128x128xbf16, #tpu.memory_space<vmem>>, %arg6: memref<1x128xf32, #tpu.memory_space<vmem>>, %arg7: memref<8x128xf32, #tpu.memory_space<vmem>>, %arg8: memref<8x384xf32, #tpu.memory_space<vmem>>) attributes {dimension_semantics = [#tpu.dimension_semantics<parallel>, #tpu.dimension_semantics<arbitrary>], iteration_bounds = array<i64: 1, 1>, scalar_prefetch = 0 : i64, scratch_operands = 1 : i64, tpu.core_type = #tpu.core_type<tc>, window_params = [{transform_indices = @transform_0, window_bounds = array<i64: 8, 12, 384>}, {pipeline_mode = #tpu.pipeline_mode<synchronous>, transform_indices = @transform_1, window_bounds = array<i64: 384, 128>}, {pipeline_mode = #tpu.pipeline_mode<synchronous>, transform_indices = @transform_2, window_bounds = array<i64: 1, 128>}, {pipeline_mode = #tpu.pipeline_mode<synchronous>, transform_indices = @transform_3, window_bounds = array<i64: 128, 128>}, {pipeline_mode = #tpu.pipeline_mode<synchronous>, transform_indices = @transform_4, window_bounds = array<i64: 1, 128>}, {transform_indices = @transform_5, window_bounds = array<i64: 8, 128>}]} {
    %c0_i32 = arith.constant 0 : i32
    %0 = arith.cmpi eq, %arg1, %c0_i32 : i32
    %1 = arith.extui %0 : i1 to i32
    %c0_i32_0 = arith.constant 0 : i32
    %2 = arith.cmpi ne, %1, %c0_i32_0 : i32
    scf.if %2 {
      %cst_9 = arith.constant 0.000000e+00 : f32
      %11 = vector.broadcast %cst_9 : f32 to vector<8x384xf32>
      %c0_10 = arith.constant 0 : index
      %c0_11 = arith.constant 0 : index
      %12 = vector.load %arg8[%c0_10, %c0_11] : memref<8x384xf32, #tpu.memory_space<vmem>>, vector<8x384xf32>
      tpu.vector_store %arg8[%c0_10, %c0_11], %11 {strides = array<i32>} : memref<8x384xf32, #tpu.memory_space<vmem>>, vector<8x384xf32>,
    } else {
    }
    %c0 = arith.constant 0 : index
    %c0_1 = arith.constant 0 : index
    %c0_2 = arith.constant 0 : index
    %3 = vector.load %arg2[%c0, %c0_1, %c0_2] : memref<8x12x384xf32, #tpu.memory_space<vmem>>, vector<8x12x384xf32>
    %c0_3 = arith.constant 0 : index
    %c0_4 = arith.constant 0 : index
    %4 = vector.load %arg8[%c0_3, %c0_4] : memref<8x384xf32, #tpu.memory_space<vmem>>, vector<8x384xf32>
    %cst = arith.constant dense<0.000000e+00> : vector<8x384xf32>
    %5 = vector.multi_reduction <add>, %3, %cst [1] : vector<8x12x384xf32> to vector<8x384xf32>
    %6 = arith.addf %4, %5 : vector<8x384xf32>
    %c0_5 = arith.constant 0 : index
    %c0_6 = arith.constant 0 : index
    %7 = vector.load %arg8[%c0_5, %c0_6] : memref<8x384xf32, #tpu.memory_space<vmem>>, vector<8x384xf32>
    tpu.vector_store %arg8[%c0_5, %c0_6], %6 {strides = array<i32>} : memref<8x384xf32, #tpu.memory_space<vmem>>, vector<8x384xf32>,
    %c0_i32_7 = arith.constant 0 : i32
    %8 = arith.cmpi eq, %arg1, %c0_i32_7 : i32
    %9 = arith.extui %8 : i1 to i32
    %c0_i32_8 = arith.constant 0 : i32
    %10 = arith.cmpi ne, %9, %c0_i32_8 : i32
    scf.if %10 {
      %c0_9 = arith.constant 0 : index
      %c0_10 = arith.constant 0 : index
      %11 = vector.load %arg8[%c0_9, %c0_10] : memref<8x384xf32, #tpu.memory_space<vmem>>, vector<8x384xf32>
      %12 = arith.truncf %11 : vector<8x384xf32> to vector<8x384xbf16>
      %c0_11 = arith.constant 0 : index
      %c0_12 = arith.constant 0 : index
      %13 = vector.load %arg3[%c0_11, %c0_12] : memref<384x128xbf16, #tpu.memory_space<vmem>>, vector<384x128xbf16>
      %cst_13 = arith.constant dense<0.000000e+00> : vector<8x128xf32>
      %14 = tpu.matmul %12, %13, %cst_13 {dimension_numbers = #tpu.dot_dimension_numbers<[1], [0], [0], [1], [0, 0, 1, 1], [], []>} : vector<8x384xbf16>, vector<384x128xbf16>, vector<8x128xf32> -> vector<8x128xf32>
      %c0_14 = arith.constant 0 : index
      %c0_15 = arith.constant 0 : index
      %15 = vector.load %arg4[%c0_14, %c0_15] : memref<1x128xf32, #tpu.memory_space<vmem>>, vector<1x128xf32>
      %16 = vector.broadcast %15 : vector<1x128xf32> to vector<8x128xf32>
      %17 = arith.addf %14, %16 : vector<8x128xf32>
      %cst_16 = arith.constant 0.000000e+00 : f32
      %18 = vector.broadcast %cst_16 : f32 to vector<8x128xf32>
      %19 = arith.maximumf %17, %18 : vector<8x128xf32>
      %20 = arith.truncf %19 : vector<8x128xf32> to vector<8x128xbf16>
      %c0_17 = arith.constant 0 : index
      %c0_18 = arith.constant 0 : index
      %21 = vector.load %arg5[%c0_17, %c0_18] : memref<128x128xbf16, #tpu.memory_space<vmem>>, vector<128x128xbf16>
      %cst_19 = arith.constant dense<0.000000e+00> : vector<8x128xf32>
      %22 = tpu.matmul %20, %21, %cst_19 {dimension_numbers = #tpu.dot_dimension_numbers<[1], [0], [0], [1], [0, 0, 1, 1], [], []>} : vector<8x128xbf16>, vector<128x128xbf16>, vector<8x128xf32> -> vector<8x128xf32>
      %c0_20 = arith.constant 0 : index
      %c0_21 = arith.constant 0 : index
      %23 = vector.load %arg6[%c0_20, %c0_21] : memref<1x128xf32, #tpu.memory_space<vmem>>, vector<1x128xf32>
      %24 = vector.broadcast %23 : vector<1x128xf32> to vector<8x128xf32>
      %25 = arith.addf %22, %24 : vector<8x128xf32>
      %c0_22 = arith.constant 0 : index
      %c0_23 = arith.constant 0 : index
      %26 = vector.load %arg7[%c0_22, %c0_23] : memref<8x128xf32, #tpu.memory_space<vmem>>, vector<8x128xf32>
      tpu.vector_store %arg7[%c0_22, %c0_23], %25 {strides = array<i32>} : memref<8x128xf32, #tpu.memory_space<vmem>>, vector<8x128xf32>,
    } else {
    }
    return
  }
  func.func @transform_0(%arg0: i32, %arg1: i32) -> (i32, i32, i32) {
    %c0_i32 = arith.constant 0 : i32
    %c0_i32_0 = arith.constant 0 : i32
    return %arg0, %arg1, %c0_i32 : i32, i32, i32
  }
  func.func @transform_1(%arg0: i32, %arg1: i32) -> (i32, i32) {
    %c0_i32 = arith.constant 0 : i32
    %c0_i32_0 = arith.constant 0 : i32
    %c0_i32_1 = arith.constant 0 : i32
    return %c0_i32, %c0_i32_0 : i32, i32
  }
  func.func @transform_2(%arg0: i32, %arg1: i32) -> (i32, i32) {
    %c0_i32 = arith.constant 0 : i32
    %c0_i32_0 = arith.constant 0 : i32
    %c0_i32_1 = arith.constant 0 : i32
    return %c0_i32, %c0_i32_0 : i32, i32
  }
  func.func @transform_3(%arg0: i32, %arg1: i32) -> (i32, i32) {
    %c0_i32 = arith.constant 0 : i32
    %c0_i32_0 = arith.constant 0 : i32
    %c0_i32_1 = arith.constant 0 : i32
    return %c0_i32, %c0_i32_0 : i32, i32
  }
  func.func @transform_4(%arg0: i32, %arg1: i32) -> (i32, i32) {
    %c0_i32 = arith.constant 0 : i32
    %c0_i32_0 = arith.constant 0 : i32
    %c0_i32_1 = arith.constant 0 : i32
    return %c0_i32, %c0_i32_0 : i32, i32
  }
  func.func @transform_5(%arg0: i32, %arg1: i32) -> (i32, i32) {
    %c0_i32 = arith.constant 0 : i32
    %c0_i32_0 = arith.constant 0 : i32
    return %arg0, %c0_i32 : i32, i32
  }
}

</mosaic_0001>

<llo_original>
// kernel: tpu_custom_call.1
$region0: #{tpu_custom_call.1}
  #allocation0 [shape = 'u32[]', space=smem, size = 0x4, offset = 0x4, fixed_abs, tag = 'smem constant byte address 0x4 - core index']
  #allocation1 [shape = 'u32[144,128]{1,0:T(1,128)}', space=vmem, size = 0x12000, scoped, tag = 'internal scratch']
  #allocation2 [shape = 'f32[8,384]{1,0:T(8,128)}', space=vmem, size = 0x3000, scoped, tag = 'scratch operand']
  %s0 = inlined_call_operand.hbm [shape: f32[6,12,384], index: 0, kind: input, shape index: {}]
  %s1 = inlined_call_operand.hbm [shape: bf16[384,128], index: 1, kind: input, shape index: {}]
  %s2 = inlined_call_operand.vmem [shape: f32[1,128], index: 2, kind: input, shape index: {}]
  %s3 = inlined_call_operand.hbm [shape: bf16[128,128], index: 3, kind: input, shape index: {}]
  %s4 = inlined_call_operand.vmem [shape: f32[1,128], index: 4, kind: input, shape index: {}]
  %s5 = inlined_call_operand.hbm [shape: f32[6,128], index: 5, kind: output, shape index: {}]
  %s6 = sld [smem:[#allocation0]]
  $region50: #{tpu_custom_call.1} parent=0
    _
  %s8 = ssub.s32 1, %s6
  %s9 = scalar_select 0, %s8, %s6
  $region1: #{tpu_custom_call.1} parent=0
    #allocation3 [shape = 'u8[196608]{0}', space=vmem, size = 0x30000, scoped, tag = 'input window, operand 0, single buffered']
    #allocation4 [shape = 's32[1]{0}', space=sflag, size = 0x4, scoped, tag = 'scoped memory for tpu_custom_call.1']
    #allocation5 [shape = 's32[1]{0}', space=sflag, size = 0x4, scoped, tag = 'scoped memory for tpu_custom_call.1']
    #allocation6 [shape = 'u8[98304]{0}', space=vmem, size = 0x18000, scoped, tag = 'input window, operand 1, single buffered']
    #allocation7 [shape = 's32[1]{0}', space=sflag, size = 0x4, scoped, tag = 'scoped memory for tpu_custom_call.1']
    #allocation8 [shape = 'u8[32768]{0}', space=vmem, size = 0x8000, scoped, tag = 'input window, operand 3, single buffered']
    #allocation9 [shape = 'u8[4096]{0}', space=vmem, size = 0x1000, scoped, tag = 'output window, operand 0, single buffered']
    %10 = vsyncpa [#allocation4], 0
    %11 = vsyncpa [#allocation7], 0
    %12 = vsyncpa [#allocation5], 0
    // Predicated region
    $region2: #{tpu_custom_call.1} parent=1 // pred_check
      _
    $region3: #{tpu_custom_call.1} parent=1 // pred_check_branch
      %14 = sbr.rel (0) target = $region5
    $region4: #{tpu_custom_call.1} parent=1 // pred_region
      %s16 = ssub.s32 6144, 4608
      %17 = vsyncadd [#allocation4], %s16
      %s18 = sshll.u32 [#allocation3], 4
      %s19 = int_to_ptr.vmem [resolvable:$true] %s18
      %24 = dma.hbm_to_vmem [thread:$0]  %s0, 4608, %s19, [#allocation4], 384, 384, 24
    $region5: #{tpu_custom_call.1} parent=1 // pred_fallthru
      _
    // Predicated region
    $region6: #{tpu_custom_call.1} parent=1 // pred_check
      _
    $region7: #{tpu_custom_call.1} parent=1 // pred_check_branch
      %26 = sbr.rel (0) target = $region9
    $region8: #{tpu_custom_call.1} parent=1 // pred_region
      %s28 = ssub.s32 3072, 3072
      %29 = vsyncadd [#allocation7], %s28
      %s30 = sshll.u32 [#allocation6], 4
      %s31 = int_to_ptr.vmem [resolvable:$true] %s30
      %36 = dma.hbm_to_vmem [thread:$0]  %s1, 3072, %s31, [#allocation7], 64, 64, 4
    $region9: #{tpu_custom_call.1} parent=1 // pred_fallthru
      _
    // Predicated region
    $region10: #{tpu_custom_call.1} parent=1 // pred_check
      _
    $region11: #{tpu_custom_call.1} parent=1 // pred_check_branch
      %38 = sbr.rel (0) target = $region13
    $region12: #{tpu_custom_call.1} parent=1 // pred_region
      _
    $region13: #{tpu_custom_call.1} parent=1 // pred_fallthru
      _
    // Predicated region
    $region14: #{tpu_custom_call.1} parent=1 // pred_check
      _
    $region15: #{tpu_custom_call.1} parent=1 // pred_check_branch
      %40 = sbr.rel (0) target = $region17
    $region16: #{tpu_custom_call.1} parent=1 // pred_region
      %s42 = ssub.s32 1024, 1024
      %43 = vsyncadd [#allocation7], %s42
      %s44 = sshll.u32 [#allocation8], 4
      %s45 = int_to_ptr.vmem [resolvable:$true] %s44
      %50 = dma.hbm_to_vmem [thread:$0]  %s3, 1024, %s45, [#allocation7], 64, 64, 4
    $region17: #{tpu_custom_call.1} parent=1 // pred_fallthru
      _
    // Predicated region
    $region18: #{tpu_custom_call.1} parent=1 // pred_check
      _
    $region19: #{tpu_custom_call.1} parent=1 // pred_check_branch
      %52 = sbr.rel (0) target = $region21
    $region20: #{tpu_custom_call.1} parent=1 // pred_region
      _
    $region21: #{tpu_custom_call.1} parent=1 // pred_fallthru
      _
    // Predicated region
    $region22: #{tpu_custom_call.1} parent=1 // pred_check
      _
    $region23: #{tpu_custom_call.1} parent=1 // pred_check_branch
      %54 = sbr.rel (0) target = $region25
    $region24: #{tpu_custom_call.1} parent=1 // pred_region
      %55 = dma.done [#allocation4], 6144
    $region25: #{tpu_custom_call.1} parent=1 // pred_fallthru
      _
    // Predicated region
    $region26: #{tpu_custom_call.1} parent=1 // pred_check
      _
    $region27: #{tpu_custom_call.1} parent=1 // pred_check_branch
      %57 = sbr.rel (0) target = $region29
    $region28: #{tpu_custom_call.1} parent=1 // pred_region
      %58 = dma.done [#allocation7], 3072
    $region29: #{tpu_custom_call.1} parent=1 // pred_fallthru
      _
    // Predicated region
    $region30: #{tpu_custom_call.1} parent=1 // pred_check
      _
    $region31: #{tpu_custom_call.1} parent=1 // pred_check_branch
      %60 = sbr.rel (0) target = $region33
    $region32: #{tpu_custom_call.1} parent=1 // pred_region
      %61 = dma.done [#allocation7], 1024
    $region33: #{tpu_custom_call.1} parent=1 // pred_fallthru
      _
    %p63 = scmp.eq.s32.totalorder 0, 0
    // Predicated region
    $region34: #{tpu_custom_call.1} parent=1 // pred_check
      %p64 = pneg %p63
    $region35: #{tpu_custom_call.1} parent=1 // pred_check_branch
      %66 = sbr.rel (%p64) target = $region37
    $region36: #{tpu_custom_call.1} parent=1 // pred_region
      %67 = vst [vmem:[#allocation2] sm:$0xff] 0.0
      %68 = vst [vmem:[#allocation2 + $0x8] sm:$0xff] 0.0
      %69 = vst [vmem:[#allocation2 + $0x10] sm:$0xff] 0.0
    $region37: #{tpu_custom_call.1} parent=1 // pred_fallthru
      _
    %v70 = vld [vmem:[#allocation3] sm:$0xff]
    %v71 = vld [vmem:[#allocation3 + $0x8] sm:$0xff]
    %v72 = vld [vmem:[#allocation3 + $0x10] sm:$0xff]
    %v73 = vld [vmem:[#allocation3 + $0x18] sm:$0xf]
    %v74 = vld [vmem:[#allocation3 + $0x20] sm:$0xf]
    %v75 = vld [vmem:[#allocation3 + $0x28] sm:$0xf]
    %v76 = vld [vmem:[#allocation3 + $0x30] sm:$0xff]
    %v77 = vld [vmem:[#allocation3 + $0x38] sm:$0xff]
    %v78 = vld [vmem:[#allocation3 + $0x40] sm:$0xff]
    %v79 = vld [vmem:[#allocation3 + $0x48] sm:$0xf]
    %v80 = vld [vmem:[#allocation3 + $0x50] sm:$0xf]
    %v81 = vld [vmem:[#allocation3 + $0x58] sm:$0xf]
    %v82 = vld [vmem:[#allocation3 + $0x60] sm:$0xff]
    %v83 = vld [vmem:[#allocation3 + $0x68] sm:$0xff]
    %v84 = vld [vmem:[#allocation3 + $0x70] sm:$0xff]
    %v85 = vld [vmem:[#allocation3 + $0x78] sm:$0xf]
    %v86 = vld [vmem:[#allocation3 + $0x80] sm:$0xf]
    %v87 = vld [vmem:[#allocation3 + $0x88] sm:$0xf]
    %v88 = vld [vmem:[#allocation3 + $0x90] sm:$0xff]
    %v89 = vld [vmem:[#allocation3 + $0x98] sm:$0xff]
    %v90 = vld [vmem:[#allocation3 + $0xa0] sm:$0xff]
    %v91 = vld [vmem:[#allocation3 + $0xa8] sm:$0xf]
    %v92 = vld [vmem:[#allocation3 + $0xb0] sm:$0xf]
    %v93 = vld [vmem:[#allocation3 + $0xb8] sm:$0xf]
    %v94 = vld [vmem:[#allocation3 + $0xc0] sm:$0xff]
    %v95 = vld [vmem:[#allocation3 + $0xc8] sm:$0xff]
    %v96 = vld [vmem:[#allocation3 + $0xd0] sm:$0xff]
    %v97 = vld [vmem:[#allocation3 + $0xd8] sm:$0xf]
    %v98 = vld [vmem:[#allocation3 + $0xe0] sm:$0xf]
    %v99 = vld [vmem:[#allocation3 + $0xe8] sm:$0xf]
    %v100 = vld [vmem:[#allocation3 + $0xf0] sm:$0xff]
    %v101 = vld [vmem:[#allocation3 + $0xf8] sm:$0xff]
    %v102 = vld [vmem:[#allocation3 + $0x100] sm:$0xff]
    %v103 = vld [vmem:[#allocation3 + $0x108] sm:$0xf]
    %v104 = vld [vmem:[#allocation3 + $0x110] sm:$0xf]
    %v105 = vld [vmem:[#allocation3 + $0x118] sm:$0xf]
    %v106 = vld [vmem:[#allocation3 + $0x120] sm:$0xff]
    %v107 = vld [vmem:[#allocation3 + $0x128] sm:$0xff]
    %v108 = vld [vmem:[#allocation3 + $0x130] sm:$0xff]
    %v109 = vld [vmem:[#allocation3 + $0x138] sm:$0xf]
    %v110 = vld [vmem:[#allocation3 + $0x140] sm:$0xf]
    %v111 = vld [vmem:[#allocation3 + $0x148] sm:$0xf]
    %v112 = vld [vmem:[#allocation3 + $0x150] sm:$0xff]
    %v113 = vld [vmem:[#allocation3 + $0x158] sm:$0xff]
    %v114 = vld [vmem:[#allocation3 + $0x160] sm:$0xff]
    %v115 = vld [vmem:[#allocation3 + $0x168] sm:$0xf]
    %v116 = vld [vmem:[#allocation3 + $0x170] sm:$0xf]
    %v117 = vld [vmem:[#allocation3 + $0x178] sm:$0xf]
    %v118 = vld [vmem:[#allocation2] sm:$0xff]
    %v119 = vld [vmem:[#allocation2 + $0x8] sm:$0xff]
    %v120 = vld [vmem:[#allocation2 + $0x10] sm:$0xff]
    %vm121 = vcmask 1043456
    %v122 = vsel %vm121, %v73, 0.0
    %v123 = vadd.f32 %v70, %v122
    %v124 = vrot.slane %v123, 4
    %v125 = vadd.f32 %v123, %v124
    %v126 = vrot.slane %v125, 2
    %v127 = vadd.f32 %v125, %v126
    %v128 = vrot.slane %v127, 1
    %v129 = vadd.f32 %v127, %v128
    %v130 = vsel %vm121, %v74, 0.0
    %v131 = vadd.f32 %v71, %v130
    %v132 = vrot.slane %v131, 4
    %v133 = vadd.f32 %v131, %v132
    %v134 = vrot.slane %v133, 2
    %v135 = vadd.f32 %v133, %v134
    %v136 = vrot.slane %v135, 1
    %v137 = vadd.f32 %v135, %v136
    %v138 = vsel %vm121, %v75, 0.0
    %v139 = vadd.f32 %v72, %v138
    %v140 = vrot.slane %v139, 4
    %v141 = vadd.f32 %v139, %v140
    %v142 = vrot.slane %v141, 2
    %v143 = vadd.f32 %v141, %v142
    %v144 = vrot.slane %v143, 1
    %v145 = vadd.f32 %v143, %v144
    %v146 = vsel %vm121, %v79, 0.0
    %v147 = vadd.f32 %v76, %v146
    %v148 = vrot.slane %v147, 4
    %v149 = vadd.f32 %v147, %v148
    %v150 = vrot.slane %v149, 2
    %v151 = vadd.f32 %v149, %v150
    %v152 = vrot.slane %v151, 1
    %v153 = vadd.f32 %v151, %v152
    %v154 = vsel %vm121, %v80, 0.0
    %v155 = vadd.f32 %v77, %v154
    %v156 = vrot.slane %v155, 4
    %v157 = vadd.f32 %v155, %v156
    %v158 = vrot.slane %v157, 2
    %v159 = vadd.f32 %v157, %v158
    %v160 = vrot.slane %v159, 1
    %v161 = vadd.f32 %v159, %v160
    %v162 = vsel %vm121, %v81, 0.0
    %v163 = vadd.f32 %v78, %v162
    %v164 = vrot.slane %v163, 4
    %v165 = vadd.f32 %v163, %v164
    %v166 = vrot.slane %v165, 2
    %v167 = vadd.f32 %v165, %v166
    %v168 = vrot.slane %v167, 1
    %v169 = vadd.f32 %v167, %v168
    %v170 = vsel %vm121, %v85, 0.0
    %v171 = vadd.f32 %v82, %v170
    %v172 = vrot.slane %v171, 4
    %v173 = vadd.f32 %v171, %v172
    %v174 = vrot.slane %v173, 2
    %v175 = vadd.f32 %v173, %v174
    %v176 = vrot.slane %v175, 1
    %v177 = vadd.f32 %v175, %v176
    %v178 = vsel %vm121, %v86, 0.0
    %v179 = vadd.f32 %v83, %v178
    %v180 = vrot.slane %v179, 4
    %v181 = vadd.f32 %v179, %v180
    %v182 = vrot.slane %v181, 2
    %v183 = vadd.f32 %v181, %v182
    %v184 = vrot.slane %v183, 1
    %v185 = vadd.f32 %v183, %v184
    %v186 = vsel %vm121, %v87, 0.0
    %v187 = vadd.f32 %v84, %v186
    %v188 = vrot.slane %v187, 4
    %v189 = vadd.f32 %v187, %v188
    %v190 = vrot.slane %v189, 2
    %v191 = vadd.f32 %v189, %v190
    %v192 = vrot.slane %v191, 1
    %v193 = vadd.f32 %v191, %v192
    %v194 = vsel %vm121, %v91, 0.0
    %v195 = vadd.f32 %v88, %v194
    %v196 = vrot.slane %v195, 4
    %v197 = vadd.f32 %v195, %v196
    %v198 = vrot.slane %v197, 2
    %v199 = vadd.f32 %v197, %v198
    %v200 = vrot.slane %v199, 1
    %v201 = vadd.f32 %v199, %v200
    %v202 = vsel %vm121, %v92, 0.0
    %v203 = vadd.f32 %v89, %v202
    %v204 = vrot.slane %v203, 4
    %v205 = vadd.f32 %v203, %v204
    %v206 = vrot.slane %v205, 2
    %v207 = vadd.f32 %v205, %v206
    %v208 = vrot.slane %v207, 1
    %v209 = vadd.f32 %v207, %v208
    %v210 = vsel %vm121, %v93, 0.0
    %v211 = vadd.f32 %v90, %v210
    %v212 = vrot.slane %v211, 4
    %v213 = vadd.f32 %v211, %v212
    %v214 = vrot.slane %v213, 2
    %v215 = vadd.f32 %v213, %v214
    %v216 = vrot.slane %v215, 1
    %v217 = vadd.f32 %v215, %v216
    %v218 = vsel %vm121, %v97, 0.0
    %v219 = vadd.f32 %v94, %v218
    %v220 = vrot.slane %v219, 4
    %v221 = vadd.f32 %v219, %v220
    %v222 = vrot.slane %v221, 2
    %v223 = vadd.f32 %v221, %v222
    %v224 = vrot.slane %v223, 1
    %v225 = vadd.f32 %v223, %v224
    %v226 = vsel %vm121, %v98, 0.0
    %v227 = vadd.f32 %v95, %v226
    %v228 = vrot.slane %v227, 4
    %v229 = vadd.f32 %v227, %v228
    %v230 = vrot.slane %v229, 2
    %v231 = vadd.f32 %v229, %v230
    %v232 = vrot.slane %v231, 1
    %v233 = vadd.f32 %v231, %v232
    %v234 = vsel %vm121, %v99, 0.0
    %v235 = vadd.f32 %v96, %v234
    %v236 = vrot.slane %v235, 4
    %v237 = vadd.f32 %v235, %v236
    %v238 = vrot.slane %v237, 2
    %v239 = vadd.f32 %v237, %v238
    %v240 = vrot.slane %v239, 1
    %v241 = vadd.f32 %v239, %v240
    %v242 = vsel %vm121, %v103, 0.0
    %v243 = vadd.f32 %v100, %v242
    %v244 = vrot.slane %v243, 4
    %v245 = vadd.f32 %v243, %v244
    %v246 = vrot.slane %v245, 2
    %v247 = vadd.f32 %v245, %v246
    %v248 = vrot.slane %v247, 1
    %v249 = vadd.f32 %v247, %v248
    %v250 = vsel %vm121, %v104, 0.0
    %v251 = vadd.f32 %v101, %v250
    %v252 = vrot.slane %v251, 4
    %v253 = vadd.f32 %v251, %v252
    %v254 = vrot.slane %v253, 2
    %v255 = vadd.f32 %v253, %v254
    %v256 = vrot.slane %v255, 1
    %v257 = vadd.f32 %v255, %v256
    %v258 = vsel %vm121, %v105, 0.0
    %v259 = vadd.f32 %v102, %v258
    %v260 = vrot.slane %v259, 4
    %v261 = vadd.f32 %v259, %v260
    %v262 = vrot.slane %v261, 2
    %v263 = vadd.f32 %v261, %v262
    %v264 = vrot.slane %v263, 1
    %v265 = vadd.f32 %v263, %v264
    %v266 = vsel %vm121, %v109, 0.0
    %v267 = vadd.f32 %v106, %v266
    %v268 = vrot.slane %v267, 4
    %v269 = vadd.f32 %v267, %v268
    %v270 = vrot.slane %v269, 2
    %v271 = vadd.f32 %v269, %v270
    %v272 = vrot.slane %v271, 1
    %v273 = vadd.f32 %v271, %v272
    %v274 = vsel %vm121, %v110, 0.0
    %v275 = vadd.f32 %v107, %v274
    %v276 = vrot.slane %v275, 4
    %v277 = vadd.f32 %v275, %v276
    %v278 = vrot.slane %v277, 2
    %v279 = vadd.f32 %v277, %v278
    %v280 = vrot.slane %v279, 1
    %v281 = vadd.f32 %v279, %v280
    %v282 = vsel %vm121, %v111, 0.0
    %v283 = vadd.f32 %v108, %v282
    %v284 = vrot.slane %v283, 4
    %v285 = vadd.f32 %v283, %v284
    %v286 = vrot.slane %v285, 2
    %v287 = vadd.f32 %v285, %v286
    %v288 = vrot.slane %v287, 1
    %v289 = vadd.f32 %v287, %v288
    %v290 = vsel %vm121, %v115, 0.0
    %v291 = vadd.f32 %v112, %v290
    %v292 = vrot.slane %v291, 4
    %v293 = vadd.f32 %v291, %v292
    %v294 = vrot.slane %v293, 2
    %v295 = vadd.f32 %v293, %v294
    %v296 = vrot.slane %v295, 1
    %v297 = vadd.f32 %v295, %v296
    %v298 = vsel %vm121, %v116, 0.0
    %v299 = vadd.f32 %v113, %v298
    %v300 = vrot.slane %v299, 4
    %v301 = vadd.f32 %v299, %v300
    %v302 = vrot.slane %v301, 2
    %v303 = vadd.f32 %v301, %v302
    %v304 = vrot.slane %v303, 1
    %v305 = vadd.f32 %v303, %v304
    %v306 = vsel %vm121, %v117, 0.0
    %v307 = vadd.f32 %v114, %v306
    %v308 = vrot.slane %v307, 4
    %v309 = vadd.f32 %v307, %v308
    %v310 = vrot.slane %v309, 2
    %v311 = vadd.f32 %v309, %v310
    %v312 = vrot.slane %v311, 1
    %v313 = vadd.f32 %v311, %v312
    %vm338 = vcmask 1041409
    %v339 = vsel %vm338, %v153, %v129
    %vm340 = vcmask 1042434
    %v341 = vsel %vm340, %v177, %v339
    %vm342 = vcmask 1043459
    %v343 = vsel %vm342, %v201, %v341
    %vm344 = vcmask 1044484
    %v345 = vsel %vm344, %v225, %v343
    %vm346 = vcmask 1045509
    %v347 = vsel %vm346, %v249, %v345
    %vm348 = vcmask 1046534
    %v349 = vsel %vm348, %v273, %v347
    %vm350 = vcmask 1047559
    %v351 = vsel %vm350, %v297, %v349
    %v352 = vsel %vm338, %v161, %v137
    %v353 = vsel %vm340, %v185, %v352
    %v354 = vsel %vm342, %v209, %v353
    %v355 = vsel %vm344, %v233, %v354
    %v356 = vsel %vm346, %v257, %v355
    %v357 = vsel %vm348, %v281, %v356
    %v358 = vsel %vm350, %v305, %v357
    %v359 = vsel %vm338, %v169, %v145
    %v360 = vsel %vm340, %v193, %v359
    %v361 = vsel %vm342, %v217, %v360
    %v362 = vsel %vm344, %v241, %v361
    %v363 = vsel %vm346, %v265, %v362
    %v364 = vsel %vm348, %v289, %v363
    %v365 = vsel %vm350, %v313, %v364
    %v369 = vadd.f32 %v118, %v351
    %v370 = vadd.f32 %v119, %v358
    %v371 = vadd.f32 %v120, %v365
    %372 = vst [vmem:[#allocation2] sm:$0xff] %v369
    %373 = vst [vmem:[#allocation2 + $0x8] sm:$0xff] %v370
    %374 = vst [vmem:[#allocation2 + $0x10] sm:$0xff] %v371
    // Predicated region
    $region38: #{tpu_custom_call.1} parent=1 // pred_check
      %p375 = pneg %p63
    $region39: #{tpu_custom_call.1} parent=1 // pred_check_branch
      %377 = sbr.rel (%p375) target = $region41
    $region40: #{tpu_custom_call.1} parent=1 // pred_region
      %v378 = vld [vmem:[#allocation2] sm:$0xff]
      %v379 = vld [vmem:[#allocation2 + $0x8] sm:$0xff]
      %v380 = vld [vmem:[#allocation2 + $0x10] sm:$0xff]
      %v381 = vpack.c.bf16 %v378, %v378
      %v382 = vpack.c.bf16 %v379, %v379
      %v383 = vpack.c.bf16 %v380, %v380
      %v384 = vld [vmem:[#allocation6] sm:$0xf]
      %v385 = vld [vmem:[#allocation6 + $0x4] sm:$0xf]
      %v386 = vld [vmem:[#allocation6 + $0x8] sm:$0xf]
      %v387 = vld [vmem:[#allocation6 + $0xc] sm:$0xf]
      %v388 = vld [vmem:[#allocation6 + $0x10] sm:$0xf]
      %v389 = vld [vmem:[#allocation6 + $0x14] sm:$0xf]
      %v390 = vld [vmem:[#allocation6 + $0x18] sm:$0xf]
      %v391 = vld [vmem:[#allocation6 + $0x1c] sm:$0xf]
      %v392 = vld [vmem:[#allocation6 + $0x20] sm:$0xf]
      %v393 = vld [vmem:[#allocation6 + $0x24] sm:$0xf]
      %v394 = vld [vmem:[#allocation6 + $0x28] sm:$0xf]
      %v395 = vld [vmem:[#allocation6 + $0x2c] sm:$0xf]
      %v396 = vld [vmem:[#allocation6 + $0x30] sm:$0xf]
      %v397 = vld [vmem:[#allocation6 + $0x34] sm:$0xf]
      %v398 = vld [vmem:[#allocation6 + $0x38] sm:$0xf]
      %v399 = vld [vmem:[#allocation6 + $0x3c] sm:$0xf]
      %v400 = vld [vmem:[#allocation6 + $0x40] sm:$0xf]
      %v401 = vld [vmem:[#allocation6 + $0x44] sm:$0xf]
      %v402 = vld [vmem:[#allocation6 + $0x48] sm:$0xf]
      %v403 = vld [vmem:[#allocation6 + $0x4c] sm:$0xf]
      %v404 = vld [vmem:[#allocation6 + $0x50] sm:$0xf]
      %v405 = vld [vmem:[#allocation6 + $0x54] sm:$0xf]
      %v406 = vld [vmem:[#allocation6 + $0x58] sm:$0xf]
      %v407 = vld [vmem:[#allocation6 + $0x5c] sm:$0xf]
      %v408 = vld [vmem:[#allocation6 + $0x60] sm:$0xf]
      %v409 = vld [vmem:[#allocation6 + $0x64] sm:$0xf]
      %v410 = vld [vmem:[#allocation6 + $0x68] sm:$0xf]
      %v411 = vld [vmem:[#allocation6 + $0x6c] sm:$0xf]
      %v412 = vld [vmem:[#allocation6 + $0x70] sm:$0xf]
      %v413 = vld [vmem:[#allocation6 + $0x74] sm:$0xf]
      %v414 = vld [vmem:[#allocation6 + $0x78] sm:$0xf]
      %v415 = vld [vmem:[#allocation6 + $0x7c] sm:$0xf]
      %v416 = vld [vmem:[#allocation6 + $0x80] sm:$0xf]
      %v417 = vld [vmem:[#allocation6 + $0x84] sm:$0xf]
      %v418 = vld [vmem:[#allocation6 + $0x88] sm:$0xf]
      %v419 = vld [vmem:[#allocation6 + $0x8c] sm:$0xf]
      %v420 = vld [vmem:[#allocation6 + $0x90] sm:$0xf]
      %v421 = vld [vmem:[#allocation6 + $0x94] sm:$0xf]
      %v422 = vld [vmem:[#allocation6 + $0x98] sm:$0xf]
      %v423 = vld [vmem:[#allocation6 + $0x9c] sm:$0xf]
      %v424 = vld [vmem:[#allocation6 + $0xa0] sm:$0xf]
      %v425 = vld [vmem:[#allocation6 + $0xa4] sm:$0xf]
      %v426 = vld [vmem:[#allocation6 + $0xa8] sm:$0xf]
      %v427 = vld [vmem:[#allocation6 + $0xac] sm:$0xf]
      %v428 = vld [vmem:[#allocation6 + $0xb0] sm:$0xf]
      %v429 = vld [vmem:[#allocation6 + $0xb4] sm:$0xf]
      %v430 = vld [vmem:[#allocation6 + $0xb8] sm:$0xf]
      %v431 = vld [vmem:[#allocation6 + $0xbc] sm:$0xf]
      %v432 = vld [vmem:[%s2] sm:$0x1]
      %v434 = vlaneseq
      %v435 = vshrl.u32 %v434, 7
      %v436 = vsub.s32 0, %v435
      %v437 = vrot.slane %v432, %v436
      %v487 = vunpack.c.l.b16 %v384
      %v488 = vunpack.c.l.b16 %v385
      %v489 = vunpack.c.l.b16 %v386
      %v490 = vunpack.c.l.b16 %v387
      %v491 = vunpack.c.l.b16 %v388
      %v492 = vunpack.c.l.b16 %v389
      %v493 = vunpack.c.l.b16 %v390
      %v494 = vunpack.c.l.b16 %v391
      %v495 = vunpack.c.l.b16 %v392
      %v496 = vunpack.c.l.b16 %v393
      %v497 = vunpack.c.l.b16 %v394
      %v498 = vunpack.c.l.b16 %v395
      %v499 = vunpack.c.l.b16 %v396
      %v500 = vunpack.c.l.b16 %v397
      %v501 = vunpack.c.l.b16 %v398
      %v502 = vunpack.c.l.b16 %v399
      %v503 = vunpack.c.l.b16 %v400
      %v504 = vunpack.c.l.b16 %v401
      %v505 = vunpack.c.l.b16 %v402
      %v506 = vunpack.c.l.b16 %v403
      %v507 = vunpack.c.l.b16 %v404
      %v508 = vunpack.c.l.b16 %v405
      %v509 = vunpack.c.l.b16 %v406
      %v510 = vunpack.c.l.b16 %v407
      %v511 = vunpack.c.l.b16 %v408
      %v512 = vunpack.c.l.b16 %v409
      %v513 = vunpack.c.l.b16 %v410
      %v514 = vunpack.c.l.b16 %v411
      %v515 = vunpack.c.l.b16 %v412
      %v516 = vunpack.c.l.b16 %v413
      %v517 = vunpack.c.l.b16 %v414
      %v518 = vunpack.c.l.b16 %v415
      %v519 = vunpack.c.l.b16 %v416
      %v520 = vunpack.c.l.b16 %v417
      %v521 = vunpack.c.l.b16 %v418
      %v522 = vunpack.c.l.b16 %v419
      %v523 = vunpack.c.l.b16 %v420
      %v524 = vunpack.c.l.b16 %v421
      %v525 = vunpack.c.l.b16 %v422
      %v526 = vunpack.c.l.b16 %v423
      %v527 = vunpack.c.l.b16 %v424
      %v528 = vunpack.c.l.b16 %v425
      %v529 = vunpack.c.l.b16 %v426
      %v530 = vunpack.c.l.b16 %v427
      %v531 = vunpack.c.l.b16 %v428
      %v532 = vunpack.c.l.b16 %v429
      %v533 = vunpack.c.l.b16 %v430
      %v534 = vunpack.c.l.b16 %v431
      %v535 = vpack.c.b16 %v488, %v487
      %v536 = vpack.c.b16 %v490, %v489
      %v537 = vpack.c.b16 %v492, %v491
      %v538 = vpack.c.b16 %v494, %v493
      %v539 = vpack.c.b16 %v496, %v495
      %v540 = vpack.c.b16 %v498, %v497
      %v541 = vpack.c.b16 %v500, %v499
      %v542 = vpack.c.b16 %v502, %v501
      %v543 = vpack.c.b16 %v504, %v503
      %v544 = vpack.c.b16 %v506, %v505
      %v545 = vpack.c.b16 %v508, %v507
      %v546 = vpack.c.b16 %v510, %v509
      %v547 = vpack.c.b16 %v512, %v511
      %v548 = vpack.c.b16 %v514, %v513
      %v549 = vpack.c.b16 %v516, %v515
      %v550 = vpack.c.b16 %v518, %v517
      %v551 = vpack.c.b16 %v520, %v519
      %v552 = vpack.c.b16 %v522, %v521
      %v553 = vpack.c.b16 %v524, %v523
      %v554 = vpack.c.b16 %v526, %v525
      %v555 = vpack.c.b16 %v528, %v527
      %v556 = vpack.c.b16 %v530, %v529
      %v557 = vpack.c.b16 %v532, %v531
      %v558 = vpack.c.b16 %v534, %v533
      %583 = vmatprep.subr.bf16.mxu0 0
      %584 = vmatpush1.bf16.msra.mxu0 %v535
      %585 = vmatprep.subr.bf16.mxu0 0
      %586 = vmatpush1.bf16.msra.mxu0 %v536
      %587 = vmatprep.subr.bf16.mxu0 0
      %588 = vmatpush1.bf16.msra.mxu0 %v537
      %589 = vmatprep.subr.bf16.mxu0 0
      %590 = vmatpush1.bf16.msra.mxu0 %v538
      %591 = vmatprep.subr.bf16.mxu0 0
      %592 = vmatpush1.bf16.msra.mxu0 %v539
      %593 = vmatprep.subr.bf16.mxu0 0
      %594 = vmatpush1.bf16.msra.mxu0 %v540
      %595 = vmatprep.subr.bf16.mxu0 0
      %596 = vmatpush1.bf16.msra.mxu0 %v541
      %597 = vmatprep.subr.bf16.mxu0 0
      %598 = vmatpush1.bf16.msra.mxu0 %v542
      %599 = vmatprep.subr.bf16.mxu0 0
      %600 = vmatpush1.bf16.msra.mxu0 %v543
      %601 = vmatprep.subr.bf16.mxu0 0
      %602 = vmatpush1.bf16.msra.mxu0 %v544
      %603 = vmatprep.subr.bf16.mxu0 0
      %604 = vmatpush1.bf16.msra.mxu0 %v545
      %605 = vmatprep.subr.bf16.mxu0 0
      %606 = vmatpush1.bf16.msra.mxu0 %v546
      %607 = vmatprep.subr.bf16.mxu0 0
      %608 = vmatpush1.bf16.msra.mxu0 %v547
      %609 = vmatprep.subr.bf16.mxu0 0
      %610 = vmatpush1.bf16.msra.mxu0 %v548
      %611 = vmatprep.subr.bf16.mxu0 0
      %612 = vmatpush1.bf16.msra.mxu0 %v549
      %613 = vmatprep.subr.bf16.mxu0 0
      %614 = vmatpush1.bf16.msra.mxu0 %v550
      %615 = vmatprep.mubr.bf16.mxu0 %v382
      %616 = vmatmul.mubr.bf16.gmra.mrb[0].mxu0 %v381
      %v617 = vpop.f32.mrb[0].mxu0
      %v618 = vadd.f32 %v437, %v617
      %v619 = vpop.f32.mrb[0].mxu0
      %v620 = vpop.f32.mrb[0].mxu0
      %v621 = vpop.f32.mrb[0].mxu0
      %622 = vdwg.mxu0
      %623 = vmatprep.subr.bf16.mxu0 0
      %624 = vmatpush1.bf16.msra.mxu0 %v551
      %625 = vmatprep.subr.bf16.mxu0 0
      %626 = vmatpush1.bf16.msra.mxu0 %v552
      %627 = vmatprep.subr.bf16.mxu0 0
      %628 = vmatpush1.bf16.msra.mxu0 %v553
      %629 = vmatprep.subr.bf16.mxu0 0
      %630 = vmatpush1.bf16.msra.mxu0 %v554
      %631 = vmatprep.subr.bf16.mxu0 0
      %632 = vmatpush1.bf16.msra.mxu0 %v555
      %633 = vmatprep.subr.bf16.mxu0 0
      %634 = vmatpush1.bf16.msra.mxu0 %v556
      %635 = vmatprep.subr.bf16.mxu0 0
      %636 = vmatpush1.bf16.msra.mxu0 %v557
      %637 = vmatprep.subr.bf16.mxu0 0
      %638 = vmatpush1.bf16.msra.mxu0 %v558
      %639 = vmatprep.subr.bf16.mxu0 0
      %640 = vmatpush1.bf16.msra.mxu0 0
      %641 = vmatprep.subr.bf16.mxu0 0
      %642 = vmatpush1.bf16.msra.mxu0 0
      %643 = vmatprep.subr.bf16.mxu0 0
      %644 = vmatpush1.bf16.msra.mxu0 0
      %645 = vmatprep.subr.bf16.mxu0 0
      %646 = vmatpush1.bf16.msra.mxu0 0
      %647 = vmatprep.subr.bf16.mxu0 0
      %648 = vmatpush1.bf16.msra.mxu0 0
      %649 = vmatprep.subr.bf16.mxu0 0
      %650 = vmatpush1.bf16.msra.mxu0 0
      %651 = vmatprep.subr.bf16.mxu0 0
      %652 = vmatpush1.bf16.msra.mxu0 0
      %653 = vmatprep.subr.bf16.mxu0 0
      %654 = vmatpush1.bf16.msra.mxu0 0
      %655 = vmatprep.mubr.bf16.mxu0 0
      %656 = vmatmul.mubr.bf16.gmra.mrb[0].mxu0 %v383
      %v657 = vpop.f32.mrb[0].mxu0
      %v658 = vadd.f32 %v618, %v657
      %v659 = vpop.f32.mrb[0].mxu0
      %v660 = vpop.f32.mrb[0].mxu0
      %v661 = vpop.f32.mrb[0].mxu0
      %662 = vdwg.mxu0
      %v663 = vmax.f32 %v658, 0.0
      %v664 = vpack.c.bf16 %v663, %v663
      %v665 = vld [vmem:[#allocation8] sm:$0xf]
      %v666 = vld [vmem:[#allocation8 + $0x4] sm:$0xf]
      %v667 = vld [vmem:[#allocation8 + $0x8] sm:$0xf]
      %v668 = vld [vmem:[#allocation8 + $0xc] sm:$0xf]
      %v669 = vld [vmem:[#allocation8 + $0x10] sm:$0xf]
      %v670 = vld [vmem:[#allocation8 + $0x14] sm:$0xf]
      %v671 = vld [vmem:[#allocation8 + $0x18] sm:$0xf]
      %v672 = vld [vmem:[#allocation8 + $0x1c] sm:$0xf]
      %v673 = vld [vmem:[#allocation8 + $0x20] sm:$0xf]
      %v674 = vld [vmem:[#allocation8 + $0x24] sm:$0xf]
      %v675 = vld [vmem:[#allocation8 + $0x28] sm:$0xf]
      %v676 = vld [vmem:[#allocation8 + $0x2c] sm:$0xf]
      %v677 = vld [vmem:[#allocation8 + $0x30] sm:$0xf]
      %v678 = vld [vmem:[#allocation8 + $0x34] sm:$0xf]
      %v679 = vld [vmem:[#allocation8 + $0x38] sm:$0xf]
      %v680 = vld [vmem:[#allocation8 + $0x3c] sm:$0xf]
      %v681 = vld [vmem:[%s4] sm:$0x1]
      %v683 = vlaneseq
      %v684 = vshrl.u32 %v683, 7
      %v685 = vsub.s32 0, %v684
      %v686 = vrot.slane %v681, %v685
      %v704 = vunpack.c.l.b16 %v665
      %v705 = vunpack.c.l.b16 %v666
      %v706 = vunpack.c.l.b16 %v667
      %v707 = vunpack.c.l.b16 %v668
      %v708 = vunpack.c.l.b16 %v669
      %v709 = vunpack.c.l.b16 %v670
      %v710 = vunpack.c.l.b16 %v671
      %v711 = vunpack.c.l.b16 %v672
      %v712 = vunpack.c.l.b16 %v673
      %v713 = vunpack.c.l.b16 %v674
      %v714 = vunpack.c.l.b16 %v675
      %v715 = vunpack.c.l.b16 %v676
      %v716 = vunpack.c.l.b16 %v677
      %v717 = vunpack.c.l.b16 %v678
      %v718 = vunpack.c.l.b16 %v679
      %v719 = vunpack.c.l.b16 %v680
      %v720 = vpack.c.b16 %v705, %v704
      %v721 = vpack.c.b16 %v707, %v706
      %v722 = vpack.c.b16 %v709, %v708
      %v723 = vpack.c.b16 %v711, %v710
      %v724 = vpack.c.b16 %v713, %v712
      %v725 = vpack.c.b16 %v715, %v714
      %v726 = vpack.c.b16 %v717, %v716
      %v727 = vpack.c.b16 %v719, %v718
      %736 = vmatprep.subr.bf16.mxu0 0
      %737 = vmatpush1.bf16.msra.mxu0 %v720
      %738 = vmatprep.subr.bf16.mxu0 0
      %739 = vmatpush1.bf16.msra.mxu0 %v721
      %740 = vmatprep.subr.bf16.mxu0 0
      %741 = vmatpush1.bf16.msra.mxu0 %v722
      %742 = vmatprep.subr.bf16.mxu0 0
      %743 = vmatpush1.bf16.msra.mxu0 %v723
      %744 = vmatprep.subr.bf16.mxu0 0
      %745 = vmatpush1.bf16.msra.mxu0 %v724
      %746 = vmatprep.subr.bf16.mxu0 0
      %747 = vmatpush1.bf16.msra.mxu0 %v725
      %748 = vmatprep.subr.bf16.mxu0 0
      %749 = vmatpush1.bf16.msra.mxu0 %v726
      %750 = vmatprep.subr.bf16.mxu0 0
      %751 = vmatpush1.bf16.msra.mxu0 %v727
      %752 = vmatprep.subr.bf16.mxu0 0
      %753 = vmatpush1.bf16.msra.mxu0 0
      %754 = vmatprep.subr.bf16.mxu0 0
      %755 = vmatpush1.bf16.msra.mxu0 0
      %756 = vmatprep.subr.bf16.mxu0 0
      %757 = vmatpush1.bf16.msra.mxu0 0
      %758 = vmatprep.subr.bf16.mxu0 0
      %759 = vmatpush1.bf16.msra.mxu0 0
      %760 = vmatprep.subr.bf16.mxu0 0
      %761 = vmatpush1.bf16.msra.mxu0 0
      %762 = vmatprep.subr.bf16.mxu0 0
      %763 = vmatpush1.bf16.msra.mxu0 0
      %764 = vmatprep.subr.bf16.mxu0 0
      %765 = vmatpush1.bf16.msra.mxu0 0
      %766 = vmatprep.subr.bf16.mxu0 0
      %767 = vmatpush1.bf16.msra.mxu0 0
      %768 = vmatprep.mubr.bf16.mxu0 0
      %769 = vmatmul.mubr.bf16.gmra.mrb[0].mxu0 %v664
      %v770 = vpop.f32.mrb[0].mxu0
      %v771 = vadd.f32 %v686, %v770
      %v772 = vpop.f32.mrb[0].mxu0
      %v773 = vpop.f32.mrb[0].mxu0
      %v774 = vpop.f32.mrb[0].mxu0
      %775 = vdwg.mxu0
      %776 = vst [vmem:[#allocation9] sm:$0xff] %v771
    $region41: #{tpu_custom_call.1} parent=1 // pred_fallthru
      _
    // Predicated region
    $region42: #{tpu_custom_call.1} parent=1 // pred_check
      _
    $region43: #{tpu_custom_call.1} parent=1 // pred_check_branch
      %778 = sbr.rel (0) target = $region45
    $region44: #{tpu_custom_call.1} parent=1 // pred_region
      %s780 = ssub.s32 128, 128
      %781 = vsyncadd [#allocation5], %s780
      %s783 = sshll.u32 [#allocation9], 4
      %s784 = int_to_ptr.vmem [resolvable:$true] %s783
      %786 = dma.vmem_to_hbm [thread:$0]  %s784, 128, %s5, [#allocation5]
    $region45: #{tpu_custom_call.1} parent=1 // pred_fallthru
      _
    // Predicated region
    $region46: #{tpu_custom_call.1} parent=1 // pred_check
      _
    $region47: #{tpu_custom_call.1} parent=1 // pred_check_branch
      %788 = sbr.rel (0) target = $region49
    $region48: #{tpu_custom_call.1} parent=1 // pred_region
      %789 = dma.done [#allocation5], 128
    $region49: #{tpu_custom_call.1} parent=1 // pred_fallthru
      _
    %790 = vsyncpa [#allocation4], 1
    %791 = vsyncpa [#allocation7], 1
    %792 = vsyncpa [#allocation5], 1

</llo_original>
